<compile_context>
chip_gen: v6e
topology: v6e:2x2x1
jax: 0.10.0
libtpu: 0.0.40
codegen_flags: <defaults>
</compile_context>

<pallas_src>
import functools

import jax
import jax.numpy as jnp
from jax import lax
from jax.experimental import pallas as pl
from jax.experimental.pallas import tpu as pltpu

LANE = 128
CHUNK_ROWS = 512        # 512 x 128 f32 = 0.25 MiB per materialized intermediate
TILE_ROWS_MAX = 8192    # 8192 x 128 f32 = 4 MiB per input DMA block


def _round_up(x, m):
    return ((x + m - 1) // m) * m


def _partial_sum(v, chunk_rows, lane):
    """(chunk_rows, lane) f32 -> (8, lane) partial sum, VPU-only vreg adds."""
    k = chunk_rows // 8
    if k % 8 == 0 and k >= 8:
        # Two-stage reduction: 8 independent accumulator chains (keeps the
        # 4 VALU slots busy / hides under DMA), then a 7-add residual.
        v = v.reshape(k // 8, 8, 8, lane)
        return jnp.sum(jnp.sum(v, axis=0), axis=0)
    return jnp.sum(v.reshape(k, 8, lane), axis=0)


def _focal_kernel(x_ref, t_ref, out_ref, *, n_valid, tile_rows, chunk_rows,
                  lane, gamma, binary_targets):
    i = pl.program_id(0)
    last = pl.num_programs(0) - 1
    nchunks = tile_rows // chunk_rows

    def chunk_fl(x, t):
        # x, t: (chunk_rows, lane) f32. Returns (1 - pt)^gamma * bce
        # (alpha is hoisted to the wrapper's final scalar multiply).
        if binary_targets:
            # Hard {0,1} targets only: 2 transcendentals/element instead of 3.
            z = (2.0 * t - 1.0) * x
            e = jnp.exp(-jnp.abs(z))
            bce = jnp.maximum(-z, 0.0) + jnp.log1p(e)     # softplus(-z)
            r = 1.0 / (1.0 + e)
            pt = jnp.where(z >= 0.0, r, e * r)            # sigmoid(z) == exp(-bce)
        else:
            # Exact BCE-with-logits for arbitrary (soft) targets:
            #   bce = max(x,0) - x*t + log(1 + exp(-|x|)); pt = exp(-bce)
            bce = jnp.maximum(x, 0.0) - x * t + jnp.log1p(jnp.exp(-jnp.abs(x)))
            pt = jnp.exp(-bce)
        omp = 1.0 - pt
        if gamma == 2.0:            # default: VPU square, no pow (exp/log pair)
            mod = omp * omp
        elif gamma == 1.0:
            mod = omp
        elif gamma == 0.0:
            mod = jnp.ones_like(omp)
        else:                       # generic gamma, guarded at omp == 0
            safe = jnp.where(omp > 0.0, jnp.maximum(omp, 1e-38), 1.0)
            mod = jnp.where(omp > 0.0, safe ** jnp.float32(gamma), 0.0)
        return mod * bce

    def tile_sum(masked):
        def body(c, acc):
            r0 = pl.multiple_of(c * chunk_rows, chunk_rows)
            x = x_ref[pl.ds(r0, chunk_rows), :].astype(jnp.float32)
            t = t_ref[pl.ds(r0, chunk_rows), :].astype(jnp.float32)
            fl = chunk_fl(x, t)
            if masked:
                # Flat element-index mask: handles both the partial last tile
                # and non-lane-divisible totals. Keep this a SELECT (never a
                # mask-multiply): out-of-bounds rows hold undefined VMEM data.
                row = (i * tile_rows + r0 + lax.broadcasted_iota(
                    jnp.int32, (chunk_rows, lane), 0))
                col = lax.broadcasted_iota(jnp.int32, (chunk_rows, lane), 1)
                fl = jnp.where(row * lane + col < n_valid, fl, 0.0)
            return acc + _partial_sum(fl, chunk_rows, lane)
        return lax.fori_loop(0, nchunks, body,
                             jnp.zeros((8, lane), jnp.float32))

    @pl.when(i < last)
    def _():
        out_ref[...] = tile_sum(False)

    @pl.when(i == last)
    def _():
        # Only the last tile can contain out-of-bounds / padded elements, so
        # steady-state tiles pay no iota/select cost.
        out_ref[...] = tile_sum(True)


def focal_loss(inputs, targets, alpha=1.0, gamma=2.0, binary_targets=False):
    """Focal loss (logits=True, reduction='elementwise_mean') -> f32 scalar."""
    assert inputs.shape == targets.shape
    n = int(inputs.size)

    x = inputs.reshape(-1)
    t = targets.reshape(-1)

    rows = pl.cdiv(n, LANE)
    if n % LANE != 0:
        # Rare ragged tail: pad the flat view (< 128 elements) in the NATIVE
        # dtype — pad values are arbitrary since the kernel masks by flat
        # element index.  TODO(synk): a fully copy-free ragged path would need
        # 1-D blocks / manual DMA.
        pad = rows * LANE - n
        x = jnp.pad(x, (0, pad))
        t = jnp.pad(t, (0, pad))
    x2 = x.reshape(rows, LANE)
    t2 = t.reshape(rows, LANE)

    # Tile selection:
    #  * rows <= 64: one small tile (whole problem is tiny).
    #  * otherwise: at least 2 balanced grid steps (v7x has 2 TensorCores),
    #    tiles grow up to TILE_ROWS_MAX (4 MiB/input f32) to amortize the
    #    fixed per-step cost, and tile_rows stays a multiple of chunk_rows.
    if rows <= 64:
        tile_rows = _round_up(rows, 32)
        chunk_rows = tile_rows
    else:
        half = pl.cdiv(rows, 2)
        if half <= CHUNK_ROWS:
            tile_rows = _round_up(half, 32)
            chunk_rows = tile_rows
        else:
            tile_rows = min(TILE_ROWS_MAX, _round_up(half, CHUNK_ROWS))
            chunk_rows = CHUNK_ROWS
    assert tile_rows % chunk_rows == 0
    num_tiles = pl.cdiv(rows, tile_rows)

    kernel = functools.partial(
        _focal_kernel, n_valid=n, tile_rows=tile_rows, chunk_rows=chunk_rows,
        lane=LANE, gamma=float(gamma), binary_targets=bool(binary_targets))

    # VMEM budget: double-buffered input blocks + tiny output blocks + f32
    # chunk intermediates; raise the scoped limit (v5e default is only 16 MiB).
    in_block_bytes = tile_rows * LANE * (x2.dtype.itemsize + t2.dtype.itemsize)
    vmem_bytes = (2 * in_block_bytes
                  + 2 * 8 * LANE * 4
                  + 10 * chunk_rows * LANE * 4)
    vmem_limit = int(min(max(32 << 20, int(vmem_bytes * 1.25)), 56 << 20))

    cost = pl.CostEstimate(
        flops=12 * n,
        transcendentals=(2 if binary_targets else 3) * n,
        bytes_accessed=(x2.dtype.itemsize + t2.dtype.itemsize) * rows * LANE
        + num_tiles * 8 * LANE * 4,
    )

    partials = pl.pallas_call(
        kernel,
        out_shape=jax.ShapeDtypeStruct((num_tiles, 8, LANE), jnp.float32),
        grid=(num_tiles,),
        in_specs=[
            pl.BlockSpec((tile_rows, LANE), lambda i: (i, 0)),
            pl.BlockSpec((tile_rows, LANE), lambda i: (i, 0)),
        ],
        out_specs=pl.BlockSpec((None, 8, LANE), lambda i: (i, 0, 0)),
        compiler_params=pltpu.CompilerParams(
            dimension_semantics=("parallel",),
            vmem_limit_bytes=vmem_limit),
        cost_estimate=cost,
    )(x2, t2)

    # Stage 2: tiny final reduction + mean + hoisted alpha, outside the kernel.
    return jnp.float32(alpha) * jnp.sum(partials) / jnp.float32(n)


def _focal_loss_ref(inputs, targets, alpha=1.0, gamma=2.0):
    x = inputs.astype(jnp.float32)
    t = targets.astype(jnp.float32)
    bce = jnp.maximum(x, 0.0) - x * t + jnp.log1p(jnp.exp(-jnp.abs(x)))
    pt = jnp.exp(-bce)
    return jnp.mean(alpha * (1.0 - pt) ** gamma * bce)


if __name__ == "__main__":
    key = jax.random.PRNGKey(0)

    # (2,4,16,16): detector-style NCHW case (single small tile).
    # (3,5,7,11):  non-lane-divisible total -> flat-index mask path.
    # (5,16,64,64): multi-tile grid (2 steps) + multi-chunk fori_loop +
    #               partial-last-tile masking.
    for shape in [(2, 4, 16, 16), (3, 5, 7, 11), (5, 16, 64, 64)]:
        key, k1, k2 = jax.random.split(key, 3)
        x = jax.random.normal(k1, shape, dtype=jnp.float32)
        t = (jax.random.uniform(k2, shape) > 0.5).astype(jnp.float32)

        ref = _focal_loss_ref(x, t, alpha=1.0, gamma=2.0)

        loss = jax.block_until_ready(focal_loss(x, t, alpha=1.0, gamma=2.0))
        assert jnp.allclose(loss, ref, rtol=1e-5, atol=1e-5), (shape, loss, ref)

        # Optional reduced-transcendental path (valid for hard {0,1} targets).
        loss_b = jax.block_until_ready(
            focal_loss(x, t, alpha=1.0, gamma=2.0, binary_targets=True))
        assert jnp.allclose(loss_b, ref, rtol=1e-5, atol=1e-5), (shape, loss_b, ref)

    print("KERNEL_OK")
</pallas_src>

<mosaic_0001>
module attributes {stable_mosaic.version = 11 : i64} {
  func.func @_focal_kernel(%arg0: i32, %arg1: memref<32x128xf32, #tpu.memory_space<vmem>>, %arg2: memref<32x128xf32, #tpu.memory_space<vmem>>, %arg3: memref<1x8x128xf32, #tpu.memory_space<vmem>>) attributes {dimension_semantics = [#tpu.dimension_semantics<parallel>], iteration_bounds = array<i64: 1>, scalar_prefetch = 0 : i64, scratch_operands = 0 : i64, tpu.core_type = #tpu.core_type<tc>, window_params = [{transform_indices = @transform_0, window_bounds = array<i64: 32, 128>}, {transform_indices = @transform_1, window_bounds = array<i64: 32, 128>}, {transform_indices = @transform_2, window_bounds = array<i64: 1, 8, 128>}]} {
    %c0_i32 = arith.constant 0 : i32
    %0 = arith.cmpi slt, %arg0, %c0_i32 : i32
    %1 = arith.extui %0 : i1 to i32
    %c0_i32_0 = arith.constant 0 : i32
    %2 = arith.cmpi ne, %1, %c0_i32_0 : i32
    scf.if %2 {
      %cst = arith.constant 0.000000e+00 : f32
      %6 = vector.broadcast %cst : f32 to vector<8x128xf32>
      %c0_i32_3 = arith.constant 0 : i32
      %c32_i32 = arith.constant 32 : i32
      %7 = arith.muli %c0_i32_3, %c32_i32 : i32
      %8 = tpu.assume_multiple %7, 32 : i32
      %9 = arith.index_cast %8 : i32 to index
      %c0 = arith.constant 0 : index
      %10 = vector.load %arg1[%9, %c0] : memref<32x128xf32, #tpu.memory_space<vmem>>, vector<32x128xf32>
      %11 = arith.index_cast %8 : i32 to index
      %c0_4 = arith.constant 0 : index
      %12 = vector.load %arg2[%11, %c0_4] : memref<32x128xf32, #tpu.memory_space<vmem>>, vector<32x128xf32>
      %cst_5 = arith.constant 0.000000e+00 : f32
      %13 = vector.broadcast %cst_5 : f32 to vector<32x128xf32>
      %14 = arith.maximumf %10, %13 : vector<32x128xf32>
      %15 = arith.mulf %10, %12 : vector<32x128xf32>
      %16 = arith.subf %14, %15 : vector<32x128xf32>
      %17 = math.absf %10 : vector<32x128xf32>
      %cst_6 = arith.constant 0.000000e+00 : f32
      %18 = vector.broadcast %cst_6 : f32 to vector<32x128xf32>
      %19 = arith.subf %18, %17 : vector<32x128xf32>
      %20 = math.exp %19 : vector<32x128xf32>
      %21 = math.log1p %20 : vector<32x128xf32>
      %22 = arith.addf %16, %21 : vector<32x128xf32>
      %cst_7 = arith.constant 0.000000e+00 : f32
      %23 = vector.broadcast %cst_7 : f32 to vector<32x128xf32>
      %24 = arith.subf %23, %22 : vector<32x128xf32>
      %25 = math.exp %24 : vector<32x128xf32>
      %cst_8 = arith.constant 1.000000e+00 : f32
      %26 = vector.broadcast %cst_8 : f32 to vector<32x128xf32>
      %27 = arith.subf %26, %25 : vector<32x128xf32>
      %28 = arith.mulf %27, %27 : vector<32x128xf32>
      %29 = arith.mulf %28, %22 : vector<32x128xf32>
      %30 = vector.shape_cast %29 : vector<32x128xf32> to vector<4x8x128xf32>
      %cst_9 = arith.constant dense<0.000000e+00> : vector<8x128xf32>
      %31 = vector.multi_reduction <add>, %30, %cst_9 [0] : vector<4x8x128xf32> to vector<8x128xf32>
      %32 = arith.addf %6, %31 : vector<8x128xf32>
      %c1_i32 = arith.constant 1 : i32
      %c0_10 = arith.constant 0 : index
      %c0_11 = arith.constant 0 : index
      %c0_12 = arith.constant 0 : index
      %33 = vector.load %arg3[%c0_10, %c0_11, %c0_12] : memref<1x8x128xf32, #tpu.memory_space<vmem>>, vector<1x8x128xf32>
      %34 = vector.shape_cast %33 : vector<1x8x128xf32> to vector<8x128xf32>
      %35 = vector.shape_cast %32 : vector<8x128xf32> to vector<1x8x128xf32>
      tpu.vector_store %arg3[%c0_10, %c0_11, %c0_12], %35 {strides = array<i32>} : memref<1x8x128xf32, #tpu.memory_space<vmem>>, vector<1x8x128xf32>,
    } else {
    }
    %c0_i32_1 = arith.constant 0 : i32
    %3 = arith.cmpi eq, %arg0, %c0_i32_1 : i32
    %4 = arith.extui %3 : i1 to i32
    %c0_i32_2 = arith.constant 0 : i32
    %5 = arith.cmpi ne, %4, %c0_i32_2 : i32
    scf.if %5 {
      %cst = arith.constant 0.000000e+00 : f32
      %6 = vector.broadcast %cst : f32 to vector<8x128xf32>
      %c0_i32_3 = arith.constant 0 : i32
      %c32_i32 = arith.constant 32 : i32
      %7 = arith.muli %c0_i32_3, %c32_i32 : i32
      %8 = tpu.assume_multiple %7, 32 : i32
      %9 = arith.index_cast %8 : i32 to index
      %c0 = arith.constant 0 : index
      %10 = vector.load %arg1[%9, %c0] : memref<32x128xf32, #tpu.memory_space<vmem>>, vector<32x128xf32>
      %11 = arith.index_cast %8 : i32 to index
      %c0_4 = arith.constant 0 : index
      %12 = vector.load %arg2[%11, %c0_4] : memref<32x128xf32, #tpu.memory_space<vmem>>, vector<32x128xf32>
      %cst_5 = arith.constant 0.000000e+00 : f32
      %13 = vector.broadcast %cst_5 : f32 to vector<32x128xf32>
      %14 = arith.maximumf %10, %13 : vector<32x128xf32>
      %15 = arith.mulf %10, %12 : vector<32x128xf32>
      %16 = arith.subf %14, %15 : vector<32x128xf32>
      %17 = math.absf %10 : vector<32x128xf32>
      %cst_6 = arith.constant 0.000000e+00 : f32
      %18 = vector.broadcast %cst_6 : f32 to vector<32x128xf32>
      %19 = arith.subf %18, %17 : vector<32x128xf32>
      %20 = math.exp %19 : vector<32x128xf32>
      %21 = math.log1p %20 : vector<32x128xf32>
      %22 = arith.addf %16, %21 : vector<32x128xf32>
      %cst_7 = arith.constant 0.000000e+00 : f32
      %23 = vector.broadcast %cst_7 : f32 to vector<32x128xf32>
      %24 = arith.subf %23, %22 : vector<32x128xf32>
      %25 = math.exp %24 : vector<32x128xf32>
      %cst_8 = arith.constant 1.000000e+00 : f32
      %26 = vector.broadcast %cst_8 : f32 to vector<32x128xf32>
      %27 = arith.subf %26, %25 : vector<32x128xf32>
      %28 = arith.mulf %27, %27 : vector<32x128xf32>
      %29 = arith.mulf %28, %22 : vector<32x128xf32>
      %c32_i32_9 = arith.constant 32 : i32
      %30 = arith.muli %arg0, %c32_i32_9 : i32
      %31 = arith.addi %30, %8 : i32
      %32 = tpu.iota {dimensions = array<i32: 0>} : vector<32x128xi32>
      %33 = vector.broadcast %31 : i32 to vector<32x128xi32>
      %34 = arith.addi %33, %32 : vector<32x128xi32>
      %35 = tpu.iota {dimensions = array<i32: 1>} : vector<32x128xi32>
      %c128_i32 = arith.constant 128 : i32
      %36 = vector.broadcast %c128_i32 : i32 to vector<32x128xi32>
      %37 = arith.muli %34, %36 : vector<32x128xi32>
      %38 = arith.addi %37, %35 : vector<32x128xi32>
      %c2048_i32 = arith.constant 2048 : i32
      %39 = vector.broadcast %c2048_i32 : i32 to vector<32x128xi32>
      %40 = arith.cmpi slt, %38, %39 : vector<32x128xi32>
      %cst_10 = arith.constant 0.000000e+00 : f32
      %41 = vector.broadcast %cst_10 : f32 to vector<32x128xf32>
      %42 = arith.select %40, %29, %41 : vector<32x128xi1>, vector<32x128xf32>
      %43 = vector.shape_cast %42 : vector<32x128xf32> to vector<4x8x128xf32>
      %cst_11 = arith.constant dense<0.000000e+00> : vector<8x128xf32>
      %44 = vector.multi_reduction <add>, %43, %cst_11 [0] : vector<4x8x128xf32> to vector<8x128xf32>
      %45 = arith.addf %6, %44 : vector<8x128xf32>
      %c1_i32 = arith.constant 1 : i32
      %c0_12 = arith.constant 0 : index
      %c0_13 = arith.constant 0 : index
      %c0_14 = arith.constant 0 : index
      %46 = vector.load %arg3[%c0_12, %c0_13, %c0_14] : memref<1x8x128xf32, #tpu.memory_space<vmem>>, vector<1x8x128xf32>
      %47 = vector.shape_cast %46 : vector<1x8x128xf32> to vector<8x128xf32>
      %48 = vector.shape_cast %45 : vector<8x128xf32> to vector<1x8x128xf32>
      tpu.vector_store %arg3[%c0_12, %c0_13, %c0_14], %48 {strides = array<i32>} : memref<1x8x128xf32, #tpu.memory_space<vmem>>, vector<1x8x128xf32>,
    } else {
    }
    return
  }
  func.func @transform_0(%arg0: i32) -> (i32, i32) {
    %c0_i32 = arith.constant 0 : i32
    %c0_i32_0 = arith.constant 0 : i32
    return %arg0, %c0_i32 : i32, i32
  }
  func.func @transform_1(%arg0: i32) -> (i32, i32) {
    %c0_i32 = arith.constant 0 : i32
    %c0_i32_0 = arith.constant 0 : i32
    return %arg0, %c0_i32 : i32, i32
  }
  func.func @transform_2(%arg0: i32) -> (i32, i32, i32) {
    %c0_i32 = arith.constant 0 : i32
    %c0_i32_0 = arith.constant 0 : i32
    %c0_i32_1 = arith.constant 0 : i32
    return %arg0, %c0_i32, %c0_i32_0 : i32, i32, i32
  }
}

</mosaic_0001>

<llo_original>
// kernel: tpu_custom_call.1
$region0: #{tpu_custom_call.1}
  #allocation0 [shape = 'u32[]', space=smem, size = 0x4, offset = 0x4, fixed_abs, tag = 'smem constant byte address 0x4 - core index']
  #allocation1 [shape = 'u32[144,128]{1,0:T(1,128)}', space=vmem, size = 0x12000, scoped, tag = 'internal scratch']
  %s0 = inlined_call_operand.hbm [shape: f32[16,128], index: 0, kind: input, shape index: {}]
  %s1 = inlined_call_operand.hbm [shape: f32[16,128], index: 1, kind: input, shape index: {}]
  %s2 = inlined_call_operand.hbm [shape: f32[1,8,128], index: 2, kind: output, shape index: {}]
  %s3 = sld [smem:[#allocation0]]
  $region34: #{tpu_custom_call.1} parent=0
    _
  %s5 = ssub.s32 1, %s3
  %s6 = scalar_select 0, %s5, %s3
  $region1: #{tpu_custom_call.1} parent=0
    #allocation2 [shape = 'u8[16384]{0}', space=vmem, size = 0x4000, scoped, tag = 'input window, operand 0, single buffered']
    #allocation3 [shape = 's32[1]{0}', space=sflag, size = 0x4, scoped, tag = 'scoped memory for tpu_custom_call.1']
    #allocation4 [shape = 's32[1]{0}', space=sflag, size = 0x4, scoped, tag = 'scoped memory for tpu_custom_call.1']
    #allocation5 [shape = 'u8[16384]{0}', space=vmem, size = 0x4000, scoped, tag = 'input window, operand 1, single buffered']
    #allocation6 [shape = 's32[1]{0}', space=sflag, size = 0x4, scoped, tag = 'scoped memory for tpu_custom_call.1']
    #allocation7 [shape = 'u8[4096]{0}', space=vmem, size = 0x1000, scoped, tag = 'output window, operand 0, single buffered']
    %7 = vsyncpa [#allocation3], 0
    %8 = vsyncpa [#allocation6], 0
    %9 = vsyncpa [#allocation4], 0
    // Predicated region
    $region2: #{tpu_custom_call.1} parent=1 // pred_check
      _
    $region3: #{tpu_custom_call.1} parent=1 // pred_check_branch
      %11 = sbr.rel (0) target = $region5
    $region4: #{tpu_custom_call.1} parent=1 // pred_region
      %s13 = ssub.s32 512, 256
      %14 = vsyncadd [#allocation3], %s13
      %s15 = sshll.u32 [#allocation2], 4
      %s16 = int_to_ptr.vmem [resolvable:$true] %s15
      %21 = dma.hbm_to_vmem [thread:$0]  %s0, 256, %s16, [#allocation3], 128, 128, 8
    $region5: #{tpu_custom_call.1} parent=1 // pred_fallthru
      _
    // Predicated region
    $region6: #{tpu_custom_call.1} parent=1 // pred_check
      _
    $region7: #{tpu_custom_call.1} parent=1 // pred_check_branch
      %23 = sbr.rel (0) target = $region9
    $region8: #{tpu_custom_call.1} parent=1 // pred_region
      %s25 = ssub.s32 512, 256
      %26 = vsyncadd [#allocation6], %s25
      %s27 = sshll.u32 [#allocation5], 4
      %s28 = int_to_ptr.vmem [resolvable:$true] %s27
      %33 = dma.hbm_to_vmem [thread:$0]  %s1, 256, %s28, [#allocation6], 128, 128, 8
    $region9: #{tpu_custom_call.1} parent=1 // pred_fallthru
      _
    // Predicated region
    $region10: #{tpu_custom_call.1} parent=1 // pred_check
      _
    $region11: #{tpu_custom_call.1} parent=1 // pred_check_branch
      %35 = sbr.rel (0) target = $region13
    $region12: #{tpu_custom_call.1} parent=1 // pred_region
      %36 = dma.done [#allocation3], 512
    $region13: #{tpu_custom_call.1} parent=1 // pred_fallthru
      _
    // Predicated region
    $region14: #{tpu_custom_call.1} parent=1 // pred_check
      _
    $region15: #{tpu_custom_call.1} parent=1 // pred_check_branch
      %38 = sbr.rel (0) target = $region17
    $region16: #{tpu_custom_call.1} parent=1 // pred_region
      %39 = dma.done [#allocation6], 512
    $region17: #{tpu_custom_call.1} parent=1 // pred_fallthru
      _
    %p40 = scmp.lt.s32.totalorder 0, 0
    // Predicated region
    $region18: #{tpu_custom_call.1} parent=1 // pred_check
      %p41 = pneg %p40
    $region19: #{tpu_custom_call.1} parent=1 // pred_check_branch
      %43 = sbr.rel (%p41) target = $region21
    $region20: #{tpu_custom_call.1} parent=1 // pred_region
      %v44 = vld [vmem:[#allocation2] sm:$0xff]
      %v45 = vld [vmem:[#allocation2 + $0x8] sm:$0xff]
      %v46 = vld [vmem:[#allocation2 + $0x10] sm:$0xff]
      %v47 = vld [vmem:[#allocation2 + $0x18] sm:$0xff]
      %v48 = vld [vmem:[#allocation5] sm:$0xff]
      %v49 = vld [vmem:[#allocation5 + $0x8] sm:$0xff]
      %v50 = vld [vmem:[#allocation5 + $0x10] sm:$0xff]
      %v51 = vld [vmem:[#allocation5 + $0x18] sm:$0xff]
      %v52 = vmax.f32 %v44, 0.0
      %v53 = vmax.f32 %v45, 0.0
      %v54 = vmax.f32 %v46, 0.0
      %v55 = vmax.f32 %v47, 0.0
      %v56 = vmul.f32 %v44, %v48
      %v57 = vmul.f32 %v45, %v49
      %v58 = vmul.f32 %v46, %v50
      %v59 = vmul.f32 %v47, %v51
      %v60 = vsub.f32 %v52, %v56
      %v61 = vsub.f32 %v53, %v57
      %v62 = vsub.f32 %v54, %v58
      %v63 = vsub.f32 %v55, %v59
      %v64 = vand.u32 2147483647, %v44
      %v65 = vand.u32 2147483647, %v45
      %v66 = vand.u32 2147483647, %v46
      %v67 = vand.u32 2147483647, %v47
      %v68 = vsub.f32 0.0, %v64
      %v69 = vsub.f32 0.0, %v65
      %v70 = vsub.f32 0.0, %v66
      %v71 = vsub.f32 0.0, %v67
      %v72 = vmul.f32 %v68, 1.442695
      %v73 = vpow.pop %v72
      %v74 = vmul.f32 %v69, 1.442695
      %v75 = vpow.pop %v74
      %v76 = vmul.f32 %v70, 1.442695
      %v77 = vpow.pop %v76
      %v78 = vmul.f32 %v71, 1.442695
      %v79 = vpow.pop %v78
      %v80 = vadd.f32 %v73, 1.0
      %v81 = vlog2.pop %v80
      %v82 = vmul.f32 %v81, 0.6931472
      %v83 = vmul.f32 -0.5, %v73
      %v84 = vadd.f32 %v83, 1.0
      %v85 = vmul.f32 %v84, %v73
      %v86 = vand.u32 2147483647, %v73
      %vm87 = vcmp.lt.f32.partialorder %v86, 0.0004427343
      %v88 = vsel %vm87, %v85, %v82
      %v89 = vadd.f32 %v75, 1.0
      %v90 = vlog2.pop %v89
      %v91 = vmul.f32 %v90, 0.6931472
      %v92 = vmul.f32 -0.5, %v75
      %v93 = vadd.f32 %v92, 1.0
      %v94 = vmul.f32 %v93, %v75
      %v95 = vand.u32 2147483647, %v75
      %vm96 = vcmp.lt.f32.partialorder %v95, 0.0004427343
      %v97 = vsel %vm96, %v94, %v91
      %v98 = vadd.f32 %v77, 1.0
      %v99 = vlog2.pop %v98
      %v100 = vmul.f32 %v99, 0.6931472
      %v101 = vmul.f32 -0.5, %v77
      %v102 = vadd.f32 %v101, 1.0
      %v103 = vmul.f32 %v102, %v77
      %v104 = vand.u32 2147483647, %v77
      %vm105 = vcmp.lt.f32.partialorder %v104, 0.0004427343
      %v106 = vsel %vm105, %v103, %v100
      %v107 = vadd.f32 %v79, 1.0
      %v108 = vlog2.pop %v107
      %v109 = vmul.f32 %v108, 0.6931472
      %v110 = vmul.f32 -0.5, %v79
      %v111 = vadd.f32 %v110, 1.0
      %v112 = vmul.f32 %v111, %v79
      %v113 = vand.u32 2147483647, %v79
      %vm114 = vcmp.lt.f32.partialorder %v113, 0.0004427343
      %v115 = vsel %vm114, %v112, %v109
      %v116 = vadd.f32 %v60, %v88
      %v117 = vadd.f32 %v61, %v97
      %v118 = vadd.f32 %v62, %v106
      %v119 = vadd.f32 %v63, %v115
      %v120 = vsub.f32 0.0, %v116
      %v121 = vsub.f32 0.0, %v117
      %v122 = vsub.f32 0.0, %v118
      %v123 = vsub.f32 0.0, %v119
      %v124 = vmul.f32 %v120, 1.442695
      %v125 = vpow.pop %v124
      %v126 = vmul.f32 %v121, 1.442695
      %v127 = vpow.pop %v126
      %v128 = vmul.f32 %v122, 1.442695
      %v129 = vpow.pop %v128
      %v130 = vmul.f32 %v123, 1.442695
      %v131 = vpow.pop %v130
      %v132 = vsub.f32 1.0, %v125
      %v133 = vsub.f32 1.0, %v127
      %v134 = vsub.f32 1.0, %v129
      %v135 = vsub.f32 1.0, %v131
      %v136 = vmul.f32 %v132, %v132
      %v137 = vmul.f32 %v133, %v133
      %v138 = vmul.f32 %v134, %v134
      %v139 = vmul.f32 %v135, %v135
      %v140 = vmul.f32 %v136, %v116
      %v141 = vmul.f32 %v137, %v117
      %v142 = vmul.f32 %v138, %v118
      %v143 = vmul.f32 %v139, %v119
      %v144 = vadd.f32 %v140, %v141
      %v145 = vadd.f32 %v144, %v142
      %v146 = vadd.f32 %v145, %v143
      %v147 = vadd.f32 %v146, 0.0
      %148 = vst [vmem:[#allocation7] sm:$0xff] %v147
    $region21: #{tpu_custom_call.1} parent=1 // pred_fallthru
      _
    %p149 = scmp.eq.s32.totalorder 0, 0
    // Predicated region
    $region22: #{tpu_custom_call.1} parent=1 // pred_check
      %p150 = pneg %p149
    $region23: #{tpu_custom_call.1} parent=1 // pred_check_branch
      %152 = sbr.rel (%p150) target = $region25
    $region24: #{tpu_custom_call.1} parent=1 // pred_region
      %v153 = vld [vmem:[#allocation2] sm:$0xff]
      %v154 = vld [vmem:[#allocation2 + $0x8] sm:$0xff]
      %v155 = vld [vmem:[#allocation2 + $0x10] sm:$0xff]
      %v156 = vld [vmem:[#allocation2 + $0x18] sm:$0xff]
      %v157 = vld [vmem:[#allocation5] sm:$0xff]
      %v158 = vld [vmem:[#allocation5 + $0x8] sm:$0xff]
      %v159 = vld [vmem:[#allocation5 + $0x10] sm:$0xff]
      %v160 = vld [vmem:[#allocation5 + $0x18] sm:$0xff]
      %v161 = vmax.f32 %v153, 0.0
      %v162 = vmax.f32 %v154, 0.0
      %v163 = vmax.f32 %v155, 0.0
      %v164 = vmax.f32 %v156, 0.0
      %v165 = vmul.f32 %v153, %v157
      %v166 = vmul.f32 %v154, %v158
      %v167 = vmul.f32 %v155, %v159
      %v168 = vmul.f32 %v156, %v160
      %v169 = vsub.f32 %v161, %v165
      %v170 = vsub.f32 %v162, %v166
      %v171 = vsub.f32 %v163, %v167
      %v172 = vsub.f32 %v164, %v168
      %v173 = vand.u32 2147483647, %v153
      %v174 = vand.u32 2147483647, %v154
      %v175 = vand.u32 2147483647, %v155
      %v176 = vand.u32 2147483647, %v156
      %v177 = vsub.f32 0.0, %v173
      %v178 = vsub.f32 0.0, %v174
      %v179 = vsub.f32 0.0, %v175
      %v180 = vsub.f32 0.0, %v176
      %v181 = vmul.f32 %v177, 1.442695
      %v182 = vpow.pop %v181
      %v183 = vmul.f32 %v178, 1.442695
      %v184 = vpow.pop %v183
      %v185 = vmul.f32 %v179, 1.442695
      %v186 = vpow.pop %v185
      %v187 = vmul.f32 %v180, 1.442695
      %v188 = vpow.pop %v187
      %v189 = vadd.f32 %v182, 1.0
      %v190 = vlog2.pop %v189
      %v191 = vmul.f32 %v190, 0.6931472
      %v192 = vmul.f32 -0.5, %v182
      %v193 = vadd.f32 %v192, 1.0
      %v194 = vmul.f32 %v193, %v182
      %v195 = vand.u32 2147483647, %v182
      %vm196 = vcmp.lt.f32.partialorder %v195, 0.0004427343
      %v197 = vsel %vm196, %v194, %v191
      %v198 = vadd.f32 %v184, 1.0
      %v199 = vlog2.pop %v198
      %v200 = vmul.f32 %v199, 0.6931472
      %v201 = vmul.f32 -0.5, %v184
      %v202 = vadd.f32 %v201, 1.0
      %v203 = vmul.f32 %v202, %v184
      %v204 = vand.u32 2147483647, %v184
      %vm205 = vcmp.lt.f32.partialorder %v204, 0.0004427343
      %v206 = vsel %vm205, %v203, %v200
      %v207 = vadd.f32 %v186, 1.0
      %v208 = vlog2.pop %v207
      %v209 = vmul.f32 %v208, 0.6931472
      %v210 = vmul.f32 -0.5, %v186
      %v211 = vadd.f32 %v210, 1.0
      %v212 = vmul.f32 %v211, %v186
      %v213 = vand.u32 2147483647, %v186
      %vm214 = vcmp.lt.f32.partialorder %v213, 0.0004427343
      %v215 = vsel %vm214, %v212, %v209
      %v216 = vadd.f32 %v188, 1.0
      %v217 = vlog2.pop %v216
      %v218 = vmul.f32 %v217, 0.6931472
      %v219 = vmul.f32 -0.5, %v188
      %v220 = vadd.f32 %v219, 1.0
      %v221 = vmul.f32 %v220, %v188
      %v222 = vand.u32 2147483647, %v188
      %vm223 = vcmp.lt.f32.partialorder %v222, 0.0004427343
      %v224 = vsel %vm223, %v221, %v218
      %v225 = vadd.f32 %v169, %v197
      %v226 = vadd.f32 %v170, %v206
      %v227 = vadd.f32 %v171, %v215
      %v228 = vadd.f32 %v172, %v224
      %v229 = vsub.f32 0.0, %v225
      %v230 = vsub.f32 0.0, %v226
      %v231 = vsub.f32 0.0, %v227
      %v232 = vsub.f32 0.0, %v228
      %v233 = vmul.f32 %v229, 1.442695
      %v234 = vpow.pop %v233
      %v235 = vmul.f32 %v230, 1.442695
      %v236 = vpow.pop %v235
      %v237 = vmul.f32 %v231, 1.442695
      %v238 = vpow.pop %v237
      %v239 = vmul.f32 %v232, 1.442695
      %v240 = vpow.pop %v239
      %v241 = vsub.f32 1.0, %v234
      %v242 = vsub.f32 1.0, %v236
      %v243 = vsub.f32 1.0, %v238
      %v244 = vsub.f32 1.0, %v240
      %v245 = vmul.f32 %v241, %v241
      %v246 = vmul.f32 %v242, %v242
      %v247 = vmul.f32 %v243, %v243
      %v248 = vmul.f32 %v244, %v244
      %v249 = vmul.f32 %v245, %v225
      %v250 = vmul.f32 %v246, %v226
      %v251 = vmul.f32 %v247, %v227
      %v252 = vmul.f32 %v248, %v228
      %s253 = smul.u32 0, 32
      %s254 = sadd.s32 %s253, 0
      %v255 = vlaneseq
      %v256 = vshrl.u32 %v255, 7
      %v257 = vadd.s32 %v256, 8
      %v258 = vadd.s32 %v256, 16
      %v259 = vadd.s32 %v256, 24
      %v260 = vstv %s254
      %v261 = vadd.s32 %v260, %v256
      %v262 = vadd.s32 %v260, %v257
      %v263 = vadd.s32 %v260, %v258
      %v264 = vadd.s32 %v260, %v259
      %v265 = vlaneseq
      %v266 = vand.u32 %v265, 127
      %v267 = vmul.u32 %v261, 128
      %v268 = vmul.u32 %v262, 128
      %v269 = vmul.u32 %v263, 128
      %v270 = vmul.u32 %v264, 128
      %v271 = vadd.s32 %v267, %v266
      %v272 = vadd.s32 %v268, %v266
      %v273 = vadd.s32 %v269, %v266
      %v274 = vadd.s32 %v270, %v266
      %vm275 = vcmp.lt.s32.totalorder %v271, 2048
      %vm276 = vcmp.lt.s32.totalorder %v272, 2048
      %vm277 = vcmp.lt.s32.totalorder %v273, 2048
      %vm278 = vcmp.lt.s32.totalorder %v274, 2048
      %v279 = vsel %vm275, %v249, 0.0
      %v280 = vsel %vm276, %v250, 0.0
      %v281 = vsel %vm277, %v251, 0.0
      %v282 = vsel %vm278, %v252, 0.0
      %v283 = vadd.f32 %v279, %v280
      %v284 = vadd.f32 %v283, %v281
      %v285 = vadd.f32 %v284, %v282
      %v286 = vadd.f32 %v285, 0.0
      %287 = vst [vmem:[#allocation7] sm:$0xff] %v286
    $region25: #{tpu_custom_call.1} parent=1 // pred_fallthru
      _
    // Predicated region
    $region26: #{tpu_custom_call.1} parent=1 // pred_check
      _
    $region27: #{tpu_custom_call.1} parent=1 // pred_check_branch
      %289 = sbr.rel (0) target = $region29
    $region28: #{tpu_custom_call.1} parent=1 // pred_region
      %s291 = ssub.s32 128, 128
      %292 = vsyncadd [#allocation4], %s291
      %s294 = sshll.u32 [#allocation7], 4
      %s295 = int_to_ptr.vmem [resolvable:$true] %s294
      %297 = dma.vmem_to_hbm [thread:$0]  %s295, 128, %s2, [#allocation4]
    $region29: #{tpu_custom_call.1} parent=1 // pred_fallthru
      _
    // Predicated region
    $region30: #{tpu_custom_call.1} parent=1 // pred_check
      _
    $region31: #{tpu_custom_call.1} parent=1 // pred_check_branch
      %299 = sbr.rel (0) target = $region33
    $region32: #{tpu_custom_call.1} parent=1 // pred_region
      %300 = dma.done [#allocation4], 128
    $region33: #{tpu_custom_call.1} parent=1 // pred_fallthru
      _
    %301 = vsyncpa [#allocation3], 1
    %302 = vsyncpa [#allocation6], 1
    %303 = vsyncpa [#allocation4], 1

</llo_original>
